<compile_context>
chip_gen: v6e
topology: v6e:2x2x1
jax: 0.10.0
libtpu: 0.0.40
codegen_flags: <defaults>
</compile_context>

<pallas_src>
import functools

import jax
import jax.numpy as jnp
from jax import lax
from jax.experimental import pallas as pl
from jax.experimental.pallas import tpu as pltpu


def _round_up(x: int, m: int) -> int:
    return ((x + m - 1) // m) * m


# ---------------------------------------------------------------------------
# Kernels
# ---------------------------------------------------------------------------

def _heads_wide_kernel(x_ref, w_ref, b_ref, o_ref):
    """x (TB,F) @ w (F,N_pad) + b -> relu -> o (TB,N_pad). Lane-dense output."""
    y = jnp.dot(x_ref[...], w_ref[...], preferred_element_type=jnp.float32)
    o_ref[...] = jnp.maximum(y + b_ref[...], 0.0)


def _heads_transposed_kernel(x_ref, wt_ref, bt_ref, o_ref):
    """Transposed-output variant for tiny heads.

    wt (Ns,F) and x (TB,F) are contracted over F -> y (Ns,TB); the lane dim
    is the batch tile, so stores stay wide while writeback per batch row is
    only Ns*4 bytes.
    """
    y = lax.dot_general(wt_ref[...], x_ref[...],
                        dimension_numbers=(((1,), (1,)), ((), ())),
                        preferred_element_type=jnp.float32)
    o_ref[...] = jnp.maximum(y + bt_ref[...], 0.0)


# ---------------------------------------------------------------------------
# Parameter fusion (done ONCE, outside the hot path)
# ---------------------------------------------------------------------------

def fuse_head_params(w_pi, b_pi, w_vf, b_vf):
    """Fuse + pad the actor/critic head parameters once.

    w_* are stored as (in_features, out_features) = PyTorch weight transposed.
    Returns (w, b, P, V, transposed) consumed by custom_network_forward.
    """
    w_pi = jnp.asarray(w_pi, jnp.float32)
    w_vf = jnp.asarray(w_vf, jnp.float32)
    b_pi = jnp.asarray(b_pi, jnp.float32)
    b_vf = jnp.asarray(b_vf, jnp.float32)
    F, P = w_pi.shape
    V = w_vf.shape[1]
    n = P + V
    transposed = n <= 64  # tiny heads -> transposed-output kernel
    if transposed:
        n_sub = _round_up(max(n, 8), 8)
        w = jnp.zeros((n_sub, F), jnp.float32)
        w = w.at[:P, :].set(w_pi.T)
        w = w.at[P:n, :].set(w_vf.T)
        b = jnp.zeros((n_sub, 1), jnp.float32)
        b = b.at[:P, 0].set(b_pi)
        b = b.at[P:n, 0].set(b_vf)
    else:
        n_pad = _round_up(n, 128)
        w = jnp.zeros((F, n_pad), jnp.float32)
        w = w.at[:, :P].set(w_pi)
        w = w.at[:, P:n].set(w_vf)
        b = jnp.zeros((1, n_pad), jnp.float32)
        b = b.at[0, :P].set(b_pi)
        b = b.at[0, P:n].set(b_vf)
    return (w, b, P, V, transposed)


# ---------------------------------------------------------------------------
# Forward
# ---------------------------------------------------------------------------

def _pick_batch_tile(B: int, align: int):
    """Batch tile size + grid length.

    * B <= 256: one tile whose block dims equal the array dims.
    * Otherwise: tile ~B/2 (>= 2 "parallel" programs so both v7x TCs get
      work), rounded to `align`, capped at 2048 rows (VMEM-safe on
      v5e/v6e/v7x, amortizes the ~0.35 us/step grid overhead).
    """
    if B <= 256:
        return B, 1
    tb = min(2048, _round_up(pl.cdiv(B, 2), align))
    return tb, pl.cdiv(B, tb)


@functools.partial(jax.jit, static_argnames=("P", "V", "transposed"))
def _forward_impl(features, w, b, *, P, V, transposed):
    features = features.astype(jnp.float32)
    B, F = features.shape

    if transposed:
        n_sub = w.shape[0]
        TB, nsteps = _pick_batch_tile(B, 128)     # TB is the output LANE dim
        out_t = pl.pallas_call(
            _heads_transposed_kernel,
            out_shape=jax.ShapeDtypeStruct((n_sub, B), jnp.float32),
            grid_spec=pltpu.PrefetchScalarGridSpec(
                num_scalar_prefetch=0,
                grid=(nsteps,),
                in_specs=[
                    pl.BlockSpec((TB, F), lambda i: (i, 0)),      # batch tile
                    pl.BlockSpec((n_sub, F), lambda i: (0, 0)),   # resident W^T
                    pl.BlockSpec((n_sub, 1), lambda i: (0, 0)),   # resident bias
                ],
                out_specs=pl.BlockSpec((n_sub, TB), lambda i: (0, i)),
            ),
            compiler_params=pltpu.CompilerParams(
                dimension_semantics=("parallel",)),
        )(features, w, b)
        latent_pi = out_t[:P, :].T
        latent_vf = out_t[P:P + V, :].T
    else:
        n_pad = w.shape[1]
        TB, nsteps = _pick_batch_tile(B, 8)
        out = pl.pallas_call(
            _heads_wide_kernel,
            out_shape=jax.ShapeDtypeStruct((B, n_pad), jnp.float32),
            grid_spec=pltpu.PrefetchScalarGridSpec(
                num_scalar_prefetch=0,
                grid=(nsteps,),
                in_specs=[
                    pl.BlockSpec((TB, F), lambda i: (i, 0)),      # batch tile
                    pl.BlockSpec((F, n_pad), lambda i: (0, 0)),   # resident W
                    pl.BlockSpec((1, n_pad), lambda i: (0, 0)),   # resident bias
                ],
                out_specs=pl.BlockSpec((TB, n_pad), lambda i: (i, 0)),
            ),
            compiler_params=pltpu.CompilerParams(
                dimension_semantics=("parallel",)),
        )(features, w, b)
        latent_pi = out[:, :P]
        latent_vf = out[:, P:P + V]

    return latent_pi, latent_vf


def custom_network_forward(features, fused_params):
    """features: (B, F). fused_params: output of fuse_head_params.

    Returns (latent_pi, latent_vf) of shapes (B, P), (B, V) — same semantics
    as CustomNetwork.forward (Linear -> ReLU per head).
    """
    w, b, P, V, transposed = fused_params
    return _forward_impl(features, w, b, P=P, V=V, transposed=transposed)


# ---------------------------------------------------------------------------
# Self-test
# ---------------------------------------------------------------------------

if __name__ == "__main__":
    key = jax.random.PRNGKey(0)
    k_x, k_wp, k_bp, k_wv, k_bv = jax.random.split(key, 5)

    batch = 8
    feature_dim = 128
    last_layer_dim_pi = 1
    last_layer_dim_vf = 1

    bound = 1.0 / jnp.sqrt(feature_dim)
    features = jax.random.normal(k_x, (batch, feature_dim), dtype=jnp.float32)
    w_pi = jax.random.uniform(k_wp, (feature_dim, last_layer_dim_pi),
                              minval=-bound, maxval=bound, dtype=jnp.float32)
    b_pi = jax.random.uniform(k_bp, (last_layer_dim_pi,),
                              minval=-bound, maxval=bound, dtype=jnp.float32)
    w_vf = jax.random.uniform(k_wv, (feature_dim, last_layer_dim_vf),
                              minval=-bound, maxval=bound, dtype=jnp.float32)
    b_vf = jax.random.uniform(k_bv, (last_layer_dim_vf,),
                              minval=-bound, maxval=bound, dtype=jnp.float32)

    # --- Tiny-head (transposed-output) path: matches the reference module. ---
    params = fuse_head_params(w_pi, b_pi, w_vf, b_vf)
    latent_pi, latent_vf = custom_network_forward(features, params)
    jax.block_until_ready((latent_pi, latent_vf))

    ref_pi = jnp.maximum(features @ w_pi + b_pi, 0.0)
    ref_vf = jnp.maximum(features @ w_vf + b_vf, 0.0)
    assert latent_pi.shape == (batch, last_layer_dim_pi)
    assert latent_vf.shape == (batch, last_layer_dim_vf)
    assert jnp.allclose(latent_pi, ref_pi, atol=1e-5)
    assert jnp.allclose(latent_vf, ref_vf, atol=1e-5)

    # --- Wide-head (lane-dense) path: same kernel family, larger heads. ---
    P2, V2 = 96, 64
    w_pi2 = jax.random.uniform(k_wp, (feature_dim, P2),
                               minval=-bound, maxval=bound, dtype=jnp.float32)
    b_pi2 = jax.random.uniform(k_bp, (P2,),
                               minval=-bound, maxval=bound, dtype=jnp.float32)
    w_vf2 = jax.random.uniform(k_wv, (feature_dim, V2),
                               minval=-bound, maxval=bound, dtype=jnp.float32)
    b_vf2 = jax.random.uniform(k_bv, (V2,),
                               minval=-bound, maxval=bound, dtype=jnp.float32)
    params2 = fuse_head_params(w_pi2, b_pi2, w_vf2, b_vf2)
    pi2, vf2 = custom_network_forward(features, params2)
    jax.block_until_ready((pi2, vf2))
    assert jnp.allclose(pi2, jnp.maximum(features @ w_pi2 + b_pi2, 0.0), atol=1e-5)
    assert jnp.allclose(vf2, jnp.maximum(features @ w_vf2 + b_vf2, 0.0), atol=1e-5)

    print("KERNEL_OK")
</pallas_src>

<mosaic_0001>
module attributes {stable_mosaic.version = 11 : i64} {
  func.func @_heads_transposed_kernel(%arg0: i32, %arg1: memref<8x128xf32, #tpu.memory_space<vmem>>, %arg2: memref<8x128xf32, #tpu.memory_space<vmem>>, %arg3: memref<8x1xf32, #tpu.memory_space<vmem>>, %arg4: memref<8x8xf32, #tpu.memory_space<vmem>>) attributes {dimension_semantics = [#tpu.dimension_semantics<parallel>], iteration_bounds = array<i64: 1>, scalar_prefetch = 0 : i64, scratch_operands = 0 : i64, tpu.core_type = #tpu.core_type<tc>, window_params = [{transform_indices = @transform_0, window_bounds = array<i64: 8, 128>}, {pipeline_mode = #tpu.pipeline_mode<synchronous>, transform_indices = @transform_1, window_bounds = array<i64: 8, 128>}, {pipeline_mode = #tpu.pipeline_mode<synchronous>, transform_indices = @transform_2, window_bounds = array<i64: 8, 1>}, {transform_indices = @transform_3, window_bounds = array<i64: 8, 8>}]} {
    %c0 = arith.constant 0 : index
    %c0_0 = arith.constant 0 : index
    %0 = vector.load %arg2[%c0, %c0_0] : memref<8x128xf32, #tpu.memory_space<vmem>>, vector<8x128xf32>
    %c0_1 = arith.constant 0 : index
    %c0_2 = arith.constant 0 : index
    %1 = vector.load %arg1[%c0_1, %c0_2] : memref<8x128xf32, #tpu.memory_space<vmem>>, vector<8x128xf32>
    %cst = arith.constant dense<0.000000e+00> : vector<8x8xf32>
    %2 = tpu.matmul %0, %1, %cst {dimension_numbers = #tpu.dot_dimension_numbers<[1], [1], [0], [0], [0, 0, 1, 0], [], []>} : vector<8x128xf32>, vector<8x128xf32>, vector<8x8xf32> -> vector<8x8xf32>
    %c0_3 = arith.constant 0 : index
    %c0_4 = arith.constant 0 : index
    %3 = vector.load %arg3[%c0_3, %c0_4] : memref<8x1xf32, #tpu.memory_space<vmem>>, vector<8x1xf32>
    %4 = vector.broadcast %3 : vector<8x1xf32> to vector<8x8xf32>
    %5 = arith.addf %2, %4 : vector<8x8xf32>
    %cst_5 = arith.constant 0.000000e+00 : f32
    %6 = vector.broadcast %cst_5 : f32 to vector<8x8xf32>
    %7 = arith.maximumf %5, %6 : vector<8x8xf32>
    %c0_6 = arith.constant 0 : index
    %c0_7 = arith.constant 0 : index
    %8 = vector.load %arg4[%c0_6, %c0_7] : memref<8x8xf32, #tpu.memory_space<vmem>>, vector<8x8xf32>
    tpu.vector_store %arg4[%c0_6, %c0_7], %7 {strides = array<i32>} : memref<8x8xf32, #tpu.memory_space<vmem>>, vector<8x8xf32>,
    return
  }
  func.func @transform_0(%arg0: i32) -> (i32, i32) {
    %c0_i32 = arith.constant 0 : i32
    %c0_i32_0 = arith.constant 0 : i32
    return %arg0, %c0_i32 : i32, i32
  }
  func.func @transform_1(%arg0: i32) -> (i32, i32) {
    %c0_i32 = arith.constant 0 : i32
    %c0_i32_0 = arith.constant 0 : i32
    %c0_i32_1 = arith.constant 0 : i32
    return %c0_i32, %c0_i32_0 : i32, i32
  }
  func.func @transform_2(%arg0: i32) -> (i32, i32) {
    %c0_i32 = arith.constant 0 : i32
    %c0_i32_0 = arith.constant 0 : i32
    %c0_i32_1 = arith.constant 0 : i32
    return %c0_i32, %c0_i32_0 : i32, i32
  }
  func.func @transform_3(%arg0: i32) -> (i32, i32) {
    %c0_i32 = arith.constant 0 : i32
    %c0_i32_0 = arith.constant 0 : i32
    return %c0_i32, %arg0 : i32, i32
  }
}

</mosaic_0001>

<llo_original>
// kernel: _forward_impl.1
$region0: #{_forward_impl.1}
  #allocation0 [shape = 'u32[]', space=smem, size = 0x4, offset = 0x4, fixed_abs, tag = 'smem constant byte address 0x4 - core index']
  #allocation1 [shape = 'u32[144,128]{1,0:T(1,128)}', space=vmem, size = 0x12000, scoped, tag = 'internal scratch']
  %s0 = inlined_call_operand.vmem [shape: f32[8,128], index: 0, kind: input, shape index: {}]
  %s1 = inlined_call_operand.hbm [shape: f32[8,128], index: 1, kind: input, shape index: {}]
  %s2 = inlined_call_operand.vmem [shape: f32[8,1], index: 2, kind: input, shape index: {}]
  %s3 = inlined_call_operand.vmem [shape: f32[8,8], index: 3, kind: output, shape index: {}]
  %s4 = sld [smem:[#allocation0]]
  $region26: #{_forward_impl.1} parent=0
    _
  %s6 = ssub.s32 1, %s4
  %s7 = scalar_select 0, %s6, %s4
  $region1: #{_forward_impl.1} parent=0
    #allocation2 [shape = 'u8[4096]{0}', space=vmem, size = 0x1000, scoped, tag = 'input window, operand 1, single buffered']
    #allocation3 [shape = 's32[1]{0}', space=sflag, size = 0x4, scoped, tag = 'scoped memory for _forward_impl.1']
    %8 = vsyncpa [#allocation3], 0
    // Predicated region
    $region2: #{_forward_impl.1} parent=1 // pred_check
      _
    $region3: #{_forward_impl.1} parent=1 // pred_check_branch
      %10 = sbr.rel (0) target = $region5
    $region4: #{_forward_impl.1} parent=1 // pred_region
      _
    $region5: #{_forward_impl.1} parent=1 // pred_fallthru
      _
    // Predicated region
    $region6: #{_forward_impl.1} parent=1 // pred_check
      _
    $region7: #{_forward_impl.1} parent=1 // pred_check_branch
      %12 = sbr.rel (0) target = $region9
    $region8: #{_forward_impl.1} parent=1 // pred_region
      %s14 = ssub.s32 128, 128
      %15 = vsyncadd [#allocation3], %s14
      %s17 = sshll.u32 [#allocation2], 4
      %s18 = int_to_ptr.vmem [resolvable:$true] %s17
      %20 = dma.hbm_to_vmem [thread:$0]  %s1, 128, %s18, [#allocation3]
    $region9: #{_forward_impl.1} parent=1 // pred_fallthru
      _
    // Predicated region
    $region10: #{_forward_impl.1} parent=1 // pred_check
      _
    $region11: #{_forward_impl.1} parent=1 // pred_check_branch
      %22 = sbr.rel (0) target = $region13
    $region12: #{_forward_impl.1} parent=1 // pred_region
      _
    $region13: #{_forward_impl.1} parent=1 // pred_fallthru
      _
    // Predicated region
    $region14: #{_forward_impl.1} parent=1 // pred_check
      _
    $region15: #{_forward_impl.1} parent=1 // pred_check_branch
      %24 = sbr.rel (0) target = $region17
    $region16: #{_forward_impl.1} parent=1 // pred_region
      %25 = dma.done [#allocation3], 128
    $region17: #{_forward_impl.1} parent=1 // pred_fallthru
      _
    %v26 = vld [vmem:[#allocation2] sm:$0xff]
    %v27 = vld [vmem:[%s0] sm:$0xff]
    %v28 = vld [vmem:[%s2] sm:$0xff]
    %30 = vset.pattern.permute.xlu0 0
    %31 = vperm.xlu0 %30, %v28
    %v32 = vpop.permute.xlu0 %31
    %34 = vmatprep.subr.mxu0 0.0
    %35 = vmatpush1.xpose.msra.mxu0 0.0
    %36 = vmatprep.subr.mxu0 0.0
    %37 = vmatpush1.xpose.msra.mxu0 0.0
    %38 = vmatprep.subr.mxu0 0.0
    %39 = vmatpush1.xpose.msra.mxu0 0.0
    %40 = vmatprep.subr.mxu0 0.0
    %41 = vmatpush1.xpose.msra.mxu0 0.0
    %42 = vmatprep.subr.mxu0 0.0
    %43 = vmatpush1.xpose.msra.mxu0 0.0
    %44 = vmatprep.subr.mxu0 0.0
    %45 = vmatpush1.xpose.msra.mxu0 0.0
    %46 = vmatprep.subr.mxu0 0.0
    %47 = vmatpush1.xpose.msra.mxu0 0.0
    %48 = vmatprep.subr.mxu0 0.0
    %49 = vmatpush1.xpose.msra.mxu0 0.0
    %50 = vmatprep.subr.mxu0 0.0
    %51 = vmatpush1.xpose.msra.mxu0 0.0
    %52 = vmatprep.subr.mxu0 0.0
    %53 = vmatpush1.xpose.msra.mxu0 0.0
    %54 = vmatprep.subr.mxu0 0.0
    %55 = vmatpush1.xpose.msra.mxu0 0.0
    %56 = vmatprep.subr.mxu0 0.0
    %57 = vmatpush1.xpose.msra.mxu0 0.0
    %58 = vmatprep.subr.mxu0 0.0
    %59 = vmatpush1.xpose.msra.mxu0 0.0
    %60 = vmatprep.subr.mxu0 0.0
    %61 = vmatpush1.xpose.msra.mxu0 0.0
    %62 = vmatprep.subr.mxu0 0.0
    %63 = vmatpush1.xpose.msra.mxu0 0.0
    %64 = vmatprep.subr.mxu0 0.0
    %65 = vmatpush1.xpose.msra.mxu0 %v27
    %66 = vmatprep.subr.mxu0 0.0
    %67 = vmatpush2.xpose.msra.mxu0 0.0
    %68 = vmatprep.subr.mxu0 0.0
    %69 = vmatpush2.xpose.msra.mxu0 0.0
    %70 = vmatprep.subr.mxu0 0.0
    %71 = vmatpush2.xpose.msra.mxu0 0.0
    %72 = vmatprep.subr.mxu0 0.0
    %73 = vmatpush2.xpose.msra.mxu0 0.0
    %74 = vmatprep.subr.mxu0 0.0
    %75 = vmatpush2.xpose.msra.mxu0 0.0
    %76 = vmatprep.subr.mxu0 0.0
    %77 = vmatpush2.xpose.msra.mxu0 0.0
    %78 = vmatprep.subr.mxu0 0.0
    %79 = vmatpush2.xpose.msra.mxu0 0.0
    %80 = vmatprep.subr.mxu0 0.0
    %81 = vmatpush2.xpose.msra.mxu0 0.0
    %82 = vmatprep.subr.mxu0 0.0
    %83 = vmatpush2.xpose.msra.mxu0 0.0
    %84 = vmatprep.subr.mxu0 0.0
    %85 = vmatpush2.xpose.msra.mxu0 0.0
    %86 = vmatprep.subr.mxu0 0.0
    %87 = vmatpush2.xpose.msra.mxu0 0.0
    %88 = vmatprep.subr.mxu0 0.0
    %89 = vmatpush2.xpose.msra.mxu0 0.0
    %90 = vmatprep.subr.mxu0 0.0
    %91 = vmatpush2.xpose.msra.mxu0 0.0
    %92 = vmatprep.subr.mxu0 0.0
    %93 = vmatpush2.xpose.msra.mxu0 0.0
    %94 = vmatprep.subr.mxu0 0.0
    %95 = vmatpush2.xpose.msra.mxu0 0.0
    %96 = vmatprep.subr.mxu0 0.0
    %97 = vmatpush2.xpose.msra.mxu0 0.0
    %98 = vmatprep.mubr.f32.mxu0 0.0
    %99 = vmatmul.mubr.f32.gmra.mxu0 %v26
    %v100 = vpop.f32.mrf.mxu0
    %v101 = vadd.f32 %v32, %v100
    %v102 = vpop.f32.mrf.mxu0
    %103 = vdwg.mxu0
    %v104 = vmax.f32 %v101, 0.0
    %vm105 = vcmask 64512
    %106 = vst.msk [vmem:[%s3] sm:$0xff] %vm105, %v104
    // Predicated region
    $region18: #{_forward_impl.1} parent=1 // pred_check
      _
    $region19: #{_forward_impl.1} parent=1 // pred_check_branch
      %108 = sbr.rel (0) target = $region21
    $region20: #{_forward_impl.1} parent=1 // pred_region
      _
    $region21: #{_forward_impl.1} parent=1 // pred_fallthru
      _
    // Predicated region
    $region22: #{_forward_impl.1} parent=1 // pred_check
      _
    $region23: #{_forward_impl.1} parent=1 // pred_check_branch
      %110 = sbr.rel (0) target = $region25
    $region24: #{_forward_impl.1} parent=1 // pred_region
      _
    $region25: #{_forward_impl.1} parent=1 // pred_fallthru
      _
    %111 = vsyncpa [#allocation3], 1

</llo_original>
